<compile_context>
chip_gen: v5e
topology: v5e:2x2
jax: 0.10.0
libtpu: 0.0.40
codegen_flags: <defaults>
</compile_context>

<pallas_src>
import functools

import jax
import jax.numpy as jnp
from jax.experimental import pallas as pl
from jax.experimental.pallas import tpu as pltpu


def _round_up(n, m):
    return ((n + m - 1) // m) * m


def layer4_kernel(x_ref,
                  w1_ref, b1_ref,
                  w2_ref, b2_ref,
                  w3_ref, b3_ref,
                  w4_ref, b4_ref,
                  out_ref,
                  *, matmul_dtype):
    # The x/4.0 pre-scale of the PyTorch module is folded into W1 offline, and
    # the wrapper already feeds x in matmul dtype (bf16 on the fast path).
    h = x_ref[...]

    def linear(h, w_ref, b_ref):
        return jnp.dot(h.astype(matmul_dtype), w_ref[...],
                       preferred_element_type=jnp.float32) + b_ref[...]

    h = jnp.maximum(linear(h, w1_ref, b1_ref), 0.0)
    h = jnp.maximum(linear(h, w2_ref, b2_ref), 0.0)
    h = jnp.maximum(linear(h, w3_ref, b3_ref), 0.0)
    logits = linear(h, w4_ref, b4_ref)          # (tb, channels), f32

    # Softmax over the class axis in f32 with an exact divide, so every row
    # sums to 1 to f32 precision (fixes the approx-reciprocal drift).
    m = jnp.max(logits, axis=1, keepdims=True)
    e = jnp.exp(logits - m)
    denom = jnp.sum(e, axis=1, keepdims=True)
    out_ref[...] = (e / denom).astype(out_ref.dtype)


def init_params(key, in_dim, h1, h2, h3, channels):
    """PyTorch-Linear-style init: U(-1/sqrt(fan_in), 1/sqrt(fan_in)).
    Weights stored (in_features, out_features) so y = x @ W + b."""
    dims = [(in_dim, h1), (h1, h2), (h2, h3), (h3, channels)]
    params = []
    for fan_in, fan_out in dims:
        key, kw, kb = jax.random.split(key, 3)
        bound = 1.0 / jnp.sqrt(jnp.float32(fan_in))
        w = jax.random.uniform(kw, (fan_in, fan_out), jnp.float32, -bound, bound)
        bias = jax.random.uniform(kb, (fan_out,), jnp.float32, -bound, bound)
        params.append((w, bias))
    return params


def prepare_params(params, matmul_dtype=jnp.bfloat16):
    """Offline parameter prep: fold x/4.0 into W1, cast weights to the matmul
    dtype (bf16 on v6e/v7x), keep biases in f32 for the adds."""
    (w1, b1), (w2, b2), (w3, b3), (w4, b4) = params
    w1 = w1 * 0.25  # x/4.0 folded here (exact power-of-two scale)
    cast_w = lambda w: w.astype(matmul_dtype)
    cast_b = lambda b: b.reshape(1, -1).astype(jnp.float32)
    return ((cast_w(w1), cast_b(b1)),
            (cast_w(w2), cast_b(b2)),
            (cast_w(w3), cast_b(b3)),
            (cast_w(w4), cast_b(b4)))


def _choose_tiling(b, tile_b, sublane=16):
    """Divisor-aware tiling: pick the number of grid steps first, then the
    smallest sublane-aligned tile covering the batch in that many steps.
    Padding waste is < `sublane` rows per step. For reasonably large batches,
    force >=2 steps so the 'parallel' axis feeds both v7x TensorCores."""
    steps = max(1, -(-b // tile_b))
    if b >= 8 * sublane:
        steps = max(steps, 2)
    tb = _round_up(-(-b // steps), sublane)
    return tb, steps


def layer4_forward(x, prepared_params, channels, *, tile_b=2048,
                   input_dtype=jnp.bfloat16):
    """x: (batch, ...) flattened to (batch, 90). Returns (batch, channels) probs (f32)."""
    (w1, b1), (w2, b2), (w3, b3), (w4, b4) = prepared_params
    matmul_dtype = w1.dtype

    b = x.shape[0]
    x2d = x.reshape(b, -1).astype(input_dtype)   # x.flatten(1); bf16 halves the input stream
    in_dim = x2d.shape[1]
    assert in_dim == w1.shape[0], f"expected {w1.shape[0]} features, got {in_dim}"

    tb, steps = _choose_tiling(b, tile_b)
    b_pad = tb * steps
    if b_pad != b:
        x2d = jnp.pad(x2d, ((0, b_pad - b), (0, 0)))

    const = lambda a: pl.BlockSpec(a.shape, lambda i, _a=a: (0,) * _a.ndim)

    weight_bytes = sum(int(a.size) * a.dtype.itemsize
                       for a in (w1, b1, w2, b2, w3, b3, w4, b4))
    flops = 2 * b_pad * sum(w.shape[0] * w.shape[1] for w in (w1, w2, w3, w4))
    bytes_accessed = (int(x2d.size) * x2d.dtype.itemsize
                      + b_pad * channels * 4 + weight_bytes)

    kernel = functools.partial(layer4_kernel, matmul_dtype=matmul_dtype)

    out = pl.pallas_call(
        kernel,
        out_shape=jax.ShapeDtypeStruct((b_pad, channels), jnp.float32),
        grid=(steps,),
        in_specs=[
            pl.BlockSpec((tb, in_dim), lambda i: (i, 0)),   # x: tiled over batch
            const(w1), const(b1),                           # weights/biases: VMEM-resident
            const(w2), const(b2),
            const(w3), const(b3),
            const(w4), const(b4),
        ],
        out_specs=pl.BlockSpec((tb, channels), lambda i: (i, 0)),
        compiler_params=pltpu.CompilerParams(
            dimension_semantics=("parallel",)),
        cost_estimate=pl.CostEstimate(
            flops=flops,
            transcendentals=b_pad * channels,
            bytes_accessed=bytes_accessed),
    )(x2d, w1, b1, w2, b2, w3, b3, w4, b4)

    return out if b_pad == b else out[:b]


if __name__ == "__main__":
    key = jax.random.PRNGKey(0)
    kx, kp = jax.random.split(key)

    # Small shapes consistent with the module: flatten(1) must yield 90 features.
    batch = 8
    x = jax.random.normal(kx, (batch, 9, 10), jnp.float32)  # flattens to (8, 90)

    h1, h2, h3, channels = 64, 32, 16, 4
    raw_params = init_params(kp, 90, h1, h2, h3, channels)

    # Pure-JAX f32 reference of the original module's forward pass (dropout = identity).
    def ref_forward(x, params):
        h = x.reshape(x.shape[0], -1) / 4.0
        for idx, (w, bias) in enumerate(params):
            h = h @ w + bias
            if idx < 3:
                h = jnp.maximum(h, 0.0)
        return jax.nn.softmax(h, axis=1)

    ref = ref_forward(x, raw_params)

    # Exact f32 path: tight check against the reference.
    out_f32 = layer4_forward(x, prepare_params(raw_params, jnp.float32), channels,
                             input_dtype=jnp.float32)
    jax.block_until_ready(out_f32)

    # Fast path (default): bf16 x stream + bf16 matmuls, f32 accumulation/softmax.
    out_bf16 = layer4_forward(x, prepare_params(raw_params, jnp.bfloat16), channels,
                              input_dtype=jnp.bfloat16)
    jax.block_until_ready(out_bf16)

    assert out_f32.shape == (batch, channels)
    assert out_bf16.shape == (batch, channels)
    # Exact normalization: rows sum to 1 to f32 precision on both paths.
    assert bool(jnp.allclose(jnp.sum(out_f32, axis=1), 1.0, atol=1e-3))
    assert bool(jnp.allclose(jnp.sum(out_bf16, axis=1), 1.0, atol=1e-3))
    assert bool(jnp.allclose(out_f32, ref, atol=5e-3, rtol=5e-3))
    assert bool(jnp.allclose(out_bf16, ref, atol=2e-2, rtol=2e-2))

    print("KERNEL_OK")
</pallas_src>

<mosaic_0001>
module attributes {stable_mosaic.version = 11 : i64} {
  func.func @layer4_kernel(%arg0: i32, %arg1: memref<16x90xf32, #tpu.memory_space<vmem>>, %arg2: memref<90x64xf32, #tpu.memory_space<vmem>>, %arg3: memref<1x64xf32, #tpu.memory_space<vmem>>, %arg4: memref<64x32xf32, #tpu.memory_space<vmem>>, %arg5: memref<1x32xf32, #tpu.memory_space<vmem>>, %arg6: memref<32x16xf32, #tpu.memory_space<vmem>>, %arg7: memref<1x16xf32, #tpu.memory_space<vmem>>, %arg8: memref<16x4xf32, #tpu.memory_space<vmem>>, %arg9: memref<1x4xf32, #tpu.memory_space<vmem>>, %arg10: memref<16x4xf32, #tpu.memory_space<vmem>>) attributes {dimension_semantics = [#tpu.dimension_semantics<parallel>], iteration_bounds = array<i64: 1>, scalar_prefetch = 0 : i64, scratch_operands = 0 : i64, tpu.core_type = #tpu.core_type<tc>, window_params = [{transform_indices = @transform_0, window_bounds = array<i64: 16, 90>}, {pipeline_mode = #tpu.pipeline_mode<synchronous>, transform_indices = @transform_1, window_bounds = array<i64: 90, 64>}, {pipeline_mode = #tpu.pipeline_mode<synchronous>, transform_indices = @transform_2, window_bounds = array<i64: 1, 64>}, {pipeline_mode = #tpu.pipeline_mode<synchronous>, transform_indices = @transform_3, window_bounds = array<i64: 64, 32>}, {pipeline_mode = #tpu.pipeline_mode<synchronous>, transform_indices = @transform_4, window_bounds = array<i64: 1, 32>}, {pipeline_mode = #tpu.pipeline_mode<synchronous>, transform_indices = @transform_5, window_bounds = array<i64: 32, 16>}, {pipeline_mode = #tpu.pipeline_mode<synchronous>, transform_indices = @transform_6, window_bounds = array<i64: 1, 16>}, {pipeline_mode = #tpu.pipeline_mode<synchronous>, transform_indices = @transform_7, window_bounds = array<i64: 16, 4>}, {pipeline_mode = #tpu.pipeline_mode<synchronous>, transform_indices = @transform_8, window_bounds = array<i64: 1, 4>}, {transform_indices = @transform_9, window_bounds = array<i64: 16, 4>}]} {
    %c0 = arith.constant 0 : index
    %c0_0 = arith.constant 0 : index
    %0 = vector.load %arg1[%c0, %c0_0] : memref<16x90xf32, #tpu.memory_space<vmem>>, vector<16x90xf32>
    %c0_1 = arith.constant 0 : index
    %c0_2 = arith.constant 0 : index
    %1 = vector.load %arg2[%c0_1, %c0_2] : memref<90x64xf32, #tpu.memory_space<vmem>>, vector<90x64xf32>
    %cst = arith.constant dense<0.000000e+00> : vector<16x64xf32>
    %2 = tpu.matmul %0, %1, %cst {dimension_numbers = #tpu.dot_dimension_numbers<[1], [0], [0], [1], [0, 0, 1, 1], [], []>} : vector<16x90xf32>, vector<90x64xf32>, vector<16x64xf32> -> vector<16x64xf32>
    %c0_3 = arith.constant 0 : index
    %c0_4 = arith.constant 0 : index
    %3 = vector.load %arg3[%c0_3, %c0_4] : memref<1x64xf32, #tpu.memory_space<vmem>>, vector<1x64xf32>
    %4 = vector.broadcast %3 : vector<1x64xf32> to vector<16x64xf32>
    %5 = arith.addf %2, %4 : vector<16x64xf32>
    %cst_5 = arith.constant 0.000000e+00 : f32
    %6 = vector.broadcast %cst_5 : f32 to vector<16x64xf32>
    %7 = arith.maximumf %5, %6 : vector<16x64xf32>
    %c0_6 = arith.constant 0 : index
    %c0_7 = arith.constant 0 : index
    %8 = vector.load %arg4[%c0_6, %c0_7] : memref<64x32xf32, #tpu.memory_space<vmem>>, vector<64x32xf32>
    %cst_8 = arith.constant dense<0.000000e+00> : vector<16x32xf32>
    %9 = tpu.matmul %7, %8, %cst_8 {dimension_numbers = #tpu.dot_dimension_numbers<[1], [0], [0], [1], [0, 0, 1, 1], [], []>} : vector<16x64xf32>, vector<64x32xf32>, vector<16x32xf32> -> vector<16x32xf32>
    %c0_9 = arith.constant 0 : index
    %c0_10 = arith.constant 0 : index
    %10 = vector.load %arg5[%c0_9, %c0_10] : memref<1x32xf32, #tpu.memory_space<vmem>>, vector<1x32xf32>
    %11 = vector.broadcast %10 : vector<1x32xf32> to vector<16x32xf32>
    %12 = arith.addf %9, %11 : vector<16x32xf32>
    %cst_11 = arith.constant 0.000000e+00 : f32
    %13 = vector.broadcast %cst_11 : f32 to vector<16x32xf32>
    %14 = arith.maximumf %12, %13 : vector<16x32xf32>
    %c0_12 = arith.constant 0 : index
    %c0_13 = arith.constant 0 : index
    %15 = vector.load %arg6[%c0_12, %c0_13] : memref<32x16xf32, #tpu.memory_space<vmem>>, vector<32x16xf32>
    %cst_14 = arith.constant dense<0.000000e+00> : vector<16x16xf32>
    %16 = tpu.matmul %14, %15, %cst_14 {dimension_numbers = #tpu.dot_dimension_numbers<[1], [0], [0], [1], [0, 0, 1, 1], [], []>} : vector<16x32xf32>, vector<32x16xf32>, vector<16x16xf32> -> vector<16x16xf32>
    %c0_15 = arith.constant 0 : index
    %c0_16 = arith.constant 0 : index
    %17 = vector.load %arg7[%c0_15, %c0_16] : memref<1x16xf32, #tpu.memory_space<vmem>>, vector<1x16xf32>
    %18 = vector.broadcast %17 : vector<1x16xf32> to vector<16x16xf32>
    %19 = arith.addf %16, %18 : vector<16x16xf32>
    %cst_17 = arith.constant 0.000000e+00 : f32
    %20 = vector.broadcast %cst_17 : f32 to vector<16x16xf32>
    %21 = arith.maximumf %19, %20 : vector<16x16xf32>
    %c0_18 = arith.constant 0 : index
    %c0_19 = arith.constant 0 : index
    %22 = vector.load %arg8[%c0_18, %c0_19] : memref<16x4xf32, #tpu.memory_space<vmem>>, vector<16x4xf32>
    %cst_20 = arith.constant dense<0.000000e+00> : vector<16x4xf32>
    %23 = tpu.matmul %21, %22, %cst_20 {dimension_numbers = #tpu.dot_dimension_numbers<[1], [0], [0], [1], [0, 0, 1, 1], [], []>} : vector<16x16xf32>, vector<16x4xf32>, vector<16x4xf32> -> vector<16x4xf32>
    %c0_21 = arith.constant 0 : index
    %c0_22 = arith.constant 0 : index
    %24 = vector.load %arg9[%c0_21, %c0_22] : memref<1x4xf32, #tpu.memory_space<vmem>>, vector<1x4xf32>
    %25 = vector.broadcast %24 : vector<1x4xf32> to vector<16x4xf32>
    %26 = arith.addf %23, %25 : vector<16x4xf32>
    %cst_23 = arith.constant dense<0xFF800000> : vector<16xf32>
    %27 = vector.multi_reduction <maximumf>, %26, %cst_23 [1] : vector<16x4xf32> to vector<16xf32>
    %28 = vector.shape_cast %27 : vector<16xf32> to vector<16x1xf32>
    %29 = vector.broadcast %28 : vector<16x1xf32> to vector<16x4xf32>
    %30 = arith.subf %26, %29 : vector<16x4xf32>
    %31 = math.exp %30 : vector<16x4xf32>
    %cst_24 = arith.constant dense<0.000000e+00> : vector<16xf32>
    %32 = vector.multi_reduction <add>, %31, %cst_24 [1] : vector<16x4xf32> to vector<16xf32>
    %33 = vector.shape_cast %32 : vector<16xf32> to vector<16x1xf32>
    %34 = vector.broadcast %33 : vector<16x1xf32> to vector<16x4xf32>
    %35 = arith.divf %31, %34 : vector<16x4xf32>
    %c0_25 = arith.constant 0 : index
    %c0_26 = arith.constant 0 : index
    %36 = vector.load %arg10[%c0_25, %c0_26] : memref<16x4xf32, #tpu.memory_space<vmem>>, vector<16x4xf32>
    tpu.vector_store %arg10[%c0_25, %c0_26], %35 {strides = array<i32>} : memref<16x4xf32, #tpu.memory_space<vmem>>, vector<16x4xf32>,
    return
  }
  func.func @transform_0(%arg0: i32) -> (i32, i32) {
    %c0_i32 = arith.constant 0 : i32
    %c0_i32_0 = arith.constant 0 : i32
    return %arg0, %c0_i32 : i32, i32
  }
  func.func @transform_1(%arg0: i32) -> (i32, i32) {
    %c0_i32 = arith.constant 0 : i32
    %c0_i32_0 = arith.constant 0 : i32
    %c0_i32_1 = arith.constant 0 : i32
    return %c0_i32, %c0_i32_0 : i32, i32
  }
  func.func @transform_2(%arg0: i32) -> (i32, i32) {
    %c0_i32 = arith.constant 0 : i32
    %c0_i32_0 = arith.constant 0 : i32
    %c0_i32_1 = arith.constant 0 : i32
    return %c0_i32, %c0_i32_0 : i32, i32
  }
  func.func @transform_3(%arg0: i32) -> (i32, i32) {
    %c0_i32 = arith.constant 0 : i32
    %c0_i32_0 = arith.constant 0 : i32
    %c0_i32_1 = arith.constant 0 : i32
    return %c0_i32, %c0_i32_0 : i32, i32
  }
  func.func @transform_4(%arg0: i32) -> (i32, i32) {
    %c0_i32 = arith.constant 0 : i32
    %c0_i32_0 = arith.constant 0 : i32
    %c0_i32_1 = arith.constant 0 : i32
    return %c0_i32, %c0_i32_0 : i32, i32
  }
  func.func @transform_5(%arg0: i32) -> (i32, i32) {
    %c0_i32 = arith.constant 0 : i32
    %c0_i32_0 = arith.constant 0 : i32
    %c0_i32_1 = arith.constant 0 : i32
    return %c0_i32, %c0_i32_0 : i32, i32
  }
  func.func @transform_6(%arg0: i32) -> (i32, i32) {
    %c0_i32 = arith.constant 0 : i32
    %c0_i32_0 = arith.constant 0 : i32
    %c0_i32_1 = arith.constant 0 : i32
    return %c0_i32, %c0_i32_0 : i32, i32
  }
  func.func @transform_7(%arg0: i32) -> (i32, i32) {
    %c0_i32 = arith.constant 0 : i32
    %c0_i32_0 = arith.constant 0 : i32
    %c0_i32_1 = arith.constant 0 : i32
    return %c0_i32, %c0_i32_0 : i32, i32
  }
  func.func @transform_8(%arg0: i32) -> (i32, i32) {
    %c0_i32 = arith.constant 0 : i32
    %c0_i32_0 = arith.constant 0 : i32
    %c0_i32_1 = arith.constant 0 : i32
    return %c0_i32, %c0_i32_0 : i32, i32
  }
  func.func @transform_9(%arg0: i32) -> (i32, i32) {
    %c0_i32 = arith.constant 0 : i32
    %c0_i32_0 = arith.constant 0 : i32
    return %arg0, %c0_i32 : i32, i32
  }
}

</mosaic_0001>

<llo_original>
// kernel: tpu_custom_call.1
$region0: #{tpu_custom_call.1}
  #allocation0 [shape = 'u32[]', space=smem, size = 0x4, offset = 0x4, fixed_abs, tag = 'smem constant byte address 0x4 - core index']
  #allocation1 [shape = 'u32[72,128]{1,0:T(1,128)}', space=vmem, size = 0x9000, scoped, tag = 'internal scratch']
  %s0 = inlined_call_operand.vmem [shape: f32[16,90], index: 0, kind: input, shape index: {}]
  %s1 = inlined_call_operand.vmem [shape: f32[90,64], index: 1, kind: input, shape index: {}]
  %s2 = inlined_call_operand.vmem [shape: f32[1,64], index: 2, kind: input, shape index: {}]
  %s3 = inlined_call_operand.vmem [shape: f32[64,32], index: 3, kind: input, shape index: {}]
  %s4 = inlined_call_operand.vmem [shape: f32[1,32], index: 4, kind: input, shape index: {}]
  %s5 = inlined_call_operand.vmem [shape: f32[32,16], index: 5, kind: input, shape index: {}]
  %s6 = inlined_call_operand.vmem [shape: f32[1,16], index: 6, kind: input, shape index: {}]
  %s7 = inlined_call_operand.vmem [shape: f32[16,4], index: 7, kind: input, shape index: {}]
  %s8 = inlined_call_operand.vmem [shape: f32[1,4], index: 8, kind: input, shape index: {}]
  %s9 = inlined_call_operand.vmem [shape: f32[16,4], index: 9, kind: output, shape index: {}]
  %s10 = sld [smem:[#allocation0]]
  $region46: #{tpu_custom_call.1} parent=0
    _
  %s12 = ssub.s32 1, %s10
  %s13 = scalar_select 0, %s12, %s10
  // Predicated region
  $region2: #{tpu_custom_call.1} parent=0 // pred_check
    _
  $region3: #{tpu_custom_call.1} parent=0 // pred_check_branch
    %15 = sbr.rel (0) target = $region5
  $region4: #{tpu_custom_call.1} parent=0 // pred_region
    _
  $region5: #{tpu_custom_call.1} parent=0 // pred_fallthru
    _
  // Predicated region
  $region6: #{tpu_custom_call.1} parent=0 // pred_check
    _
  $region7: #{tpu_custom_call.1} parent=0 // pred_check_branch
    %17 = sbr.rel (0) target = $region9
  $region8: #{tpu_custom_call.1} parent=0 // pred_region
    _
  $region9: #{tpu_custom_call.1} parent=0 // pred_fallthru
    _
  // Predicated region
  $region10: #{tpu_custom_call.1} parent=0 // pred_check
    _
  $region11: #{tpu_custom_call.1} parent=0 // pred_check_branch
    %19 = sbr.rel (0) target = $region13
  $region12: #{tpu_custom_call.1} parent=0 // pred_region
    _
  $region13: #{tpu_custom_call.1} parent=0 // pred_fallthru
    _
  // Predicated region
  $region14: #{tpu_custom_call.1} parent=0 // pred_check
    _
  $region15: #{tpu_custom_call.1} parent=0 // pred_check_branch
    %21 = sbr.rel (0) target = $region17
  $region16: #{tpu_custom_call.1} parent=0 // pred_region
    _
  $region17: #{tpu_custom_call.1} parent=0 // pred_fallthru
    _
  // Predicated region
  $region18: #{tpu_custom_call.1} parent=0 // pred_check
    _
  $region19: #{tpu_custom_call.1} parent=0 // pred_check_branch
    %23 = sbr.rel (0) target = $region21
  $region20: #{tpu_custom_call.1} parent=0 // pred_region
    _
  $region21: #{tpu_custom_call.1} parent=0 // pred_fallthru
    _
  // Predicated region
  $region22: #{tpu_custom_call.1} parent=0 // pred_check
    _
  $region23: #{tpu_custom_call.1} parent=0 // pred_check_branch
    %25 = sbr.rel (0) target = $region25
  $region24: #{tpu_custom_call.1} parent=0 // pred_region
    _
  $region25: #{tpu_custom_call.1} parent=0 // pred_fallthru
    _
  // Predicated region
  $region26: #{tpu_custom_call.1} parent=0 // pred_check
    _
  $region27: #{tpu_custom_call.1} parent=0 // pred_check_branch
    %27 = sbr.rel (0) target = $region29
  $region28: #{tpu_custom_call.1} parent=0 // pred_region
    _
  $region29: #{tpu_custom_call.1} parent=0 // pred_fallthru
    _
  // Predicated region
  $region30: #{tpu_custom_call.1} parent=0 // pred_check
    _
  $region31: #{tpu_custom_call.1} parent=0 // pred_check_branch
    %29 = sbr.rel (0) target = $region33
  $region32: #{tpu_custom_call.1} parent=0 // pred_region
    _
  $region33: #{tpu_custom_call.1} parent=0 // pred_fallthru
    _
  // Predicated region
  $region34: #{tpu_custom_call.1} parent=0 // pred_check
    _
  $region35: #{tpu_custom_call.1} parent=0 // pred_check_branch
    %31 = sbr.rel (0) target = $region37
  $region36: #{tpu_custom_call.1} parent=0 // pred_region
    _
  $region37: #{tpu_custom_call.1} parent=0 // pred_fallthru
    _
  %v32 = vld [vmem:[%s0] sm:$0xff]
  %v33 = vld [vmem:[%s0 + $0x8] sm:$0xff]
  %v34 = vld [vmem:[%s1] sm:$0xff]
  %v35 = vld [vmem:[%s1 + $0x8] sm:$0xff]
  %v36 = vld [vmem:[%s1 + $0x10] sm:$0xff]
  %v37 = vld [vmem:[%s1 + $0x18] sm:$0xff]
  %v38 = vld [vmem:[%s1 + $0x20] sm:$0xff]
  %v39 = vld [vmem:[%s1 + $0x28] sm:$0xff]
  %v40 = vld [vmem:[%s1 + $0x30] sm:$0xff]
  %v41 = vld [vmem:[%s1 + $0x38] sm:$0xff]
  %v42 = vld [vmem:[%s1 + $0x40] sm:$0xff]
  %v43 = vld [vmem:[%s1 + $0x48] sm:$0xff]
  %v44 = vld [vmem:[%s1 + $0x50] sm:$0xff]
  %v45 = vld [vmem:[%s1 + $0x58] sm:$0x3]
  %v46 = vld [vmem:[%s2] sm:$0x1]
  %v48 = vperm.slane %v46, 0
  %vm50 = vcmask 736256
  %v52 = vsel %vm50, %v32, 0
  %v55 = vsel %vm50, %v33, 0
  %vm57 = vcmask 1041408
  %v59 = vsel %vm57, %v45, 0
  %61 = vmatpush.msra.mxu0 0.0
  %62 = vmatpush.msra.mxu0 0.0
  %63 = vmatpush.msra.mxu0 0.0
  %64 = vmatpush.msra.mxu0 0.0
  %65 = vmatpush.msra.mxu0 %v59
  %66 = vmatpush.msra.mxu0 %v44
  %67 = vmatpush.msra.mxu0 %v43
  %68 = vmatpush.msra.mxu0 %v42
  %69 = vmatpush.msra.mxu0 %v41
  %70 = vmatpush.msra.mxu0 %v40
  %71 = vmatpush.msra.mxu0 %v39
  %72 = vmatpush.msra.mxu0 %v38
  %73 = vmatpush.msra.mxu0 %v37
  %74 = vmatpush.msra.mxu0 %v36
  %75 = vmatpush.msra.mxu0 %v35
  %76 = vmatpush.msra.mxu0 %v34
  %77 = vmatmul.f32.gmra.mxu0 %v52
  %v78 = vpop.f32.mrf.mxu0
  %v79 = vadd.f32 %v48, %v78
  %80 = vmatmul.f32.gmra.mxu0 %v55
  %v81 = vpop.f32.mrf.mxu0
  %v82 = vadd.f32 %v48, %v81
  %83 = vdwg.mxu0
  %v84 = vmax.f32 %v79, 0.0
  %v85 = vmax.f32 %v82, 0.0
  %v86 = vld [vmem:[%s3] sm:$0xff]
  %v87 = vld [vmem:[%s3 + $0x8] sm:$0xff]
  %v88 = vld [vmem:[%s3 + $0x10] sm:$0xff]
  %v89 = vld [vmem:[%s3 + $0x18] sm:$0xff]
  %v90 = vld [vmem:[%s3 + $0x20] sm:$0xff]
  %v91 = vld [vmem:[%s3 + $0x28] sm:$0xff]
  %v92 = vld [vmem:[%s3 + $0x30] sm:$0xff]
  %v93 = vld [vmem:[%s3 + $0x38] sm:$0xff]
  %v94 = vld [vmem:[%s4] sm:$0x1]
  %v96 = vperm.slane %v94, 0
  %vm98 = vcmask 523264
  %v100 = vsel %vm98, %v84, 0
  %v103 = vsel %vm98, %v85, 0
  %105 = vmatpush.msra.mxu0 0.0
  %106 = vmatpush.msra.mxu0 0.0
  %107 = vmatpush.msra.mxu0 0.0
  %108 = vmatpush.msra.mxu0 0.0
  %109 = vmatpush.msra.mxu0 0.0
  %110 = vmatpush.msra.mxu0 0.0
  %111 = vmatpush.msra.mxu0 0.0
  %112 = vmatpush.msra.mxu0 0.0
  %113 = vmatpush.msra.mxu0 %v93
  %114 = vmatpush.msra.mxu0 %v92
  %115 = vmatpush.msra.mxu0 %v91
  %116 = vmatpush.msra.mxu0 %v90
  %117 = vmatpush.msra.mxu0 %v89
  %118 = vmatpush.msra.mxu0 %v88
  %119 = vmatpush.msra.mxu0 %v87
  %120 = vmatpush.msra.mxu0 %v86
  %121 = vmatmul.f32.gmra.mxu0 %v100
  %v122 = vpop.f32.mrf.mxu0
  %v123 = vadd.f32 %v96, %v122
  %124 = vmatmul.f32.gmra.mxu0 %v103
  %v125 = vpop.f32.mrf.mxu0
  %v126 = vadd.f32 %v96, %v125
  %127 = vdwg.mxu0
  %v128 = vmax.f32 %v123, 0.0
  %v129 = vmax.f32 %v126, 0.0
  %v130 = vld [vmem:[%s5] sm:$0xff]
  %v131 = vld [vmem:[%s5 + $0x8] sm:$0xff]
  %v132 = vld [vmem:[%s5 + $0x10] sm:$0xff]
  %v133 = vld [vmem:[%s5 + $0x18] sm:$0xff]
  %v134 = vld [vmem:[%s6] sm:$0x1]
  %v136 = vperm.slane %v134, 0
  %vm138 = vcmask 261120
  %v140 = vsel %vm138, %v128, 0
  %v143 = vsel %vm138, %v129, 0
  %145 = vmatpush.msra.mxu0 0.0
  %146 = vmatpush.msra.mxu0 0.0
  %147 = vmatpush.msra.mxu0 0.0
  %148 = vmatpush.msra.mxu0 0.0
  %149 = vmatpush.msra.mxu0 0.0
  %150 = vmatpush.msra.mxu0 0.0
  %151 = vmatpush.msra.mxu0 0.0
  %152 = vmatpush.msra.mxu0 0.0
  %153 = vmatpush.msra.mxu0 0.0
  %154 = vmatpush.msra.mxu0 0.0
  %155 = vmatpush.msra.mxu0 0.0
  %156 = vmatpush.msra.mxu0 0.0
  %157 = vmatpush.msra.mxu0 %v133
  %158 = vmatpush.msra.mxu0 %v132
  %159 = vmatpush.msra.mxu0 %v131
  %160 = vmatpush.msra.mxu0 %v130
  %161 = vmatmul.f32.gmra.mxu0 %v140
  %v162 = vpop.f32.mrf.mxu0
  %v163 = vadd.f32 %v136, %v162
  %164 = vmatmul.f32.gmra.mxu0 %v143
  %v165 = vpop.f32.mrf.mxu0
  %v166 = vadd.f32 %v136, %v165
  %167 = vdwg.mxu0
  %v168 = vmax.f32 %v163, 0.0
  %v169 = vmax.f32 %v166, 0.0
  %v170 = vld [vmem:[%s7] sm:$0xff]
  %v171 = vld [vmem:[%s7 + $0x8] sm:$0xff]
  %v172 = vld [vmem:[%s8] sm:$0x1]
  %v174 = vperm.slane %v172, 0
  %vm176 = vcmask 130048
  %v178 = vsel %vm176, %v168, 0
  %v181 = vsel %vm176, %v169, 0
  %183 = vmatpush.msra.mxu0 0.0
  %184 = vmatpush.msra.mxu0 0.0
  %185 = vmatpush.msra.mxu0 0.0
  %186 = vmatpush.msra.mxu0 0.0
  %187 = vmatpush.msra.mxu0 0.0
  %188 = vmatpush.msra.mxu0 0.0
  %189 = vmatpush.msra.mxu0 0.0
  %190 = vmatpush.msra.mxu0 0.0
  %191 = vmatpush.msra.mxu0 0.0
  %192 = vmatpush.msra.mxu0 0.0
  %193 = vmatpush.msra.mxu0 0.0
  %194 = vmatpush.msra.mxu0 0.0
  %195 = vmatpush.msra.mxu0 0.0
  %196 = vmatpush.msra.mxu0 0.0
  %197 = vmatpush.msra.mxu0 %v171
  %198 = vmatpush.msra.mxu0 %v170
  %199 = vmatmul.f32.gmra.mxu0 %v178
  %v200 = vpop.f32.mrf.mxu0
  %v201 = vadd.f32 %v174, %v200
  %202 = vmatmul.f32.gmra.mxu0 %v181
  %v203 = vpop.f32.mrf.mxu0
  %v204 = vadd.f32 %v174, %v203
  %205 = vdwg.mxu0
  %vm206 = vcmask 31744
  %v207 = vsel %vm206, %v201, -inf
  %208 = vmax.xlane.f32.xlu0 %v207
  %v209 = vpop.xlane.xlu0 %208
  %v210 = vsel %vm206, %v204, -inf
  %211 = vmax.xlane.f32.xlu0 %v210
  %v212 = vpop.xlane.xlu0 %211
  %v213 = vsub.f32 %v201, %v209
  %v214 = vsub.f32 %v204, %v212
  %v215 = vmul.f32 %v213, 1.442695
  %v216 = vpow.pop %v215
  %v217 = vmul.f32 %v214, 1.442695
  %v218 = vpow.pop %v217
  %v219 = vsel %vm206, %v216, 0.0
  %220 = vadd.xlane.f32.xlu0 %v219
  %v221 = vpop.xlane.xlu0 %220
  %v222 = vsel %vm206, %v218, 0.0
  %223 = vadd.xlane.f32.xlu0 %v222
  %v224 = vpop.xlane.xlu0 %223
  %v225 = vrcp.pop %v221
  %v226 = vmul.f32 %v221, %v225
  %v227 = vsub.f32 1.0, %v226
  %v228 = vmul.f32 %v225, %v227
  %v229 = vadd.f32 %v225, %v228
  %vm230 = vweird.f32 %v221
  %vm231 = vweird.f32 %v225
  %vm232 = vmor %vm230, %vm231
  %v233 = vsel %vm232, %v225, %v229
  %v234 = vand.u32 2147483647, %v221
  %vm235 = vcmp.eq.f32.partialorder %v234, 8.507059e+37
  %v236 = vand.u32 %v221, 2147483648
  %v237 = vor.u32 1.1754944e-38, %v236
  %v238 = vsel %vm235, %v237, %v233
  %v239 = vmul.f32 %v216, %v238
  %v240 = vrcp.pop %v224
  %v241 = vmul.f32 %v224, %v240
  %v242 = vsub.f32 1.0, %v241
  %v243 = vmul.f32 %v240, %v242
  %v244 = vadd.f32 %v240, %v243
  %vm245 = vweird.f32 %v224
  %vm246 = vweird.f32 %v240
  %vm247 = vmor %vm245, %vm246
  %v248 = vsel %vm247, %v240, %v244
  %v249 = vand.u32 2147483647, %v224
  %vm250 = vcmp.eq.f32.partialorder %v249, 8.507059e+37
  %v251 = vand.u32 %v224, 2147483648
  %v252 = vor.u32 1.1754944e-38, %v251
  %v253 = vsel %vm250, %v252, %v248
  %v254 = vmul.f32 %v218, %v253
  %255 = vst.msk [vmem:[%s9] sm:$0xff] %vm206, %v239
  %256 = vst.msk [vmem:[%s9 + $0x8] sm:$0xff] %vm206, %v254
  // Predicated region
  $region38: #{tpu_custom_call.1} parent=0 // pred_check
    _
  $region39: #{tpu_custom_call.1} parent=0 // pred_check_branch
    %258 = sbr.rel (0) target = $region41
  $region40: #{tpu_custom_call.1} parent=0 // pred_region
    _
  $region41: #{tpu_custom_call.1} parent=0 // pred_fallthru
    _
  // Predicated region
  $region42: #{tpu_custom_call.1} parent=0 // pred_check
    _
  $region43: #{tpu_custom_call.1} parent=0 // pred_check_branch
    %260 = sbr.rel (0) target = $region45
  $region44: #{tpu_custom_call.1} parent=0 // pred_region
    _
  $region45: #{tpu_custom_call.1} parent=0 // pred_fallthru
    _

</llo_original>
